<compile_context>
chip_gen: v7x
topology: tpu7x:2x2x1
jax: 0.10.0
libtpu: 0.0.40
codegen_flags: <defaults>
</compile_context>

<pallas_src>
import jax
import jax.numpy as jnp
from jax.experimental import pallas as pl
from jax.experimental.pallas import tpu as pltpu


# ----------------------------------------------------------------------------
# helpers
# ----------------------------------------------------------------------------
def _round_up(x, m):
    return ((x + m - 1) // m) * m


def _lane_pad(d):
    return _round_up(max(int(d), 1), 128)


def _sub_pad(d):
    return _round_up(max(int(d), 1), 8)


def _vmem_limit_bytes():
    """Generation-aware scoped-VMEM limit (v5e/v6e: 128 MiB physical -> 96 MiB,
    v7x: 64 MiB physical -> 48 MiB).  Falls back to a value safe on all gens."""
    try:
        info = pltpu.get_tpu_info()
        cap = getattr(info, "vmem_capacity_bytes", None)
        if cap:
            return int(min(cap * 3 // 4, 96 * 1024 * 1024))
    except Exception:
        pass
    return 48 * 1024 * 1024


def _pick_tiles(m, dims, total, f_pad, in_itemsize, w_itemsize, out_itemsize,
                vmem_limit):
    """Pick (TM, TN) using padded VMEM shapes and counting resident weight,
    bias, double-buffered tiles and in-kernel temporaries."""
    budget = int(vmem_limit * 0.85)          # headroom for compiler temps

    # --- TN: keep the (double-buffered) weight slice within ~half the budget.
    w_rows = _sub_pad(total)
    full_w_cost = 2 * w_rows * f_pad * w_itemsize
    if full_w_cost <= budget // 2 or f_pad <= 256:
        tn = f_pad
    else:
        tn = ((budget // 2) // (2 * w_rows * w_itemsize)) // 256 * 256
        tn = max(256, min(tn, f_pad))        # multiples of 256 (v6e/v7x MXU)
    w_cost = 2 * w_rows * tn * w_itemsize
    b_cost = 2 * 8 * tn * 4                  # bias kept in f32

    # --- TM: largest tile fitting the remaining budget.
    rem = budget - w_cost - b_cost
    per_row = (2 * sum(_lane_pad(d) for d in dims) * in_itemsize  # x tiles (x2 buf)
               + 2 * tn * out_itemsize                            # out tile (x2 buf)
               + _lane_pad(total) * in_itemsize                   # in-kernel concat temp
               + tn * 4)                                          # f32 acc temp
    tm = rem // max(per_row, 1)
    tm = max(64, (tm // 64) * 64)
    tm = min(tm, 2048)
    if m <= tm:
        tm = m                               # full dim -> always legal
    return int(tm), int(tn)


# ----------------------------------------------------------------------------
# kernel
# ----------------------------------------------------------------------------
def _make_fusion_kernel(n_feats):
    """One (M, N) tile: out = concat_k(x_k) @ W + bias, f32 accumulation."""

    def kernel(*refs):
        x_refs = refs[:n_feats]              # each [TM, D_k]
        w_ref = refs[n_feats]                # [total, TN]
        b_ref = refs[n_feats + 1]            # [1, TN]  (f32)
        o_ref = refs[n_feats + 2]            # [TM, TN]

        if n_feats == 1:
            x_cat = x_refs[0][...]
        else:
            # Concat in VMEM on 32-bit vregs (exact), then cast to the weight
            # dtype so the MXU runs on its peak-rate (bf16) path.
            x_cat = jnp.concatenate(
                [r[...].astype(jnp.float32) for r in x_refs], axis=-1)
        x_cat = x_cat.astype(w_ref.dtype)

        acc = jnp.dot(x_cat, w_ref[...], preferred_element_type=jnp.float32)
        o_ref[...] = (acc + b_ref[...].astype(jnp.float32)).astype(o_ref.dtype)

    return kernel


# ----------------------------------------------------------------------------
# parameter prep (once, outside the hot path) + forward
# ----------------------------------------------------------------------------
def prepare_params(weight, bias, param_dtype=None):
    """weight: [fused_dim, total] (nn.Linear layout), bias: [fused_dim].
    Returns (w_t [total, F_pad], bias2d [1, F_pad] f32, fused_dim) with
    fused_dim padded to a multiple of 128 for lane-dense stores."""
    fused_dim, _total = int(weight.shape[0]), int(weight.shape[1])
    f_pad = _round_up(fused_dim, 128)
    w_t = jnp.transpose(weight)                           # [total, fused_dim]
    b = bias
    if f_pad != fused_dim:
        w_t = jnp.pad(w_t, ((0, 0), (0, f_pad - fused_dim)))
        b = jnp.pad(b, (0, f_pad - fused_dim))
    if param_dtype is not None:
        w_t = w_t.astype(param_dtype)
    b2d = b.astype(jnp.float32).reshape(1, f_pad)
    return w_t, b2d, fused_dim


def core_fusion_forward(features, w_t, b2d, fused_dim):
    """features: dict name -> [..., D_k] (same leading dims, same dtype)
       w_t:      [total, F_pad]   (from prepare_params)
       b2d:      [1, F_pad] f32   (from prepare_params)
       returns   [..., fused_dim]"""
    xs = list(features.values())
    lead_shape = xs[0].shape[:-1]
    dims = [int(x.shape[-1]) for x in xs]
    total = sum(dims)
    assert int(w_t.shape[0]) == total, "weight/feature dim mismatch"
    f_pad = int(w_t.shape[1])
    out_dtype = xs[0].dtype

    m = 1
    for d in lead_shape:
        m *= int(d)
    xs2d = [x.reshape(m, d) for x, d in zip(xs, dims)]

    in_itemsize = jnp.dtype(out_dtype).itemsize
    w_itemsize = jnp.dtype(w_t.dtype).itemsize
    vmem_limit = _vmem_limit_bytes()
    tm, tn = _pick_tiles(m, dims, total, f_pad,
                         in_itemsize, w_itemsize, in_itemsize, vmem_limit)

    # Grid: (N outer, M inner) -> weight N-slice stays VMEM-resident across
    # the inner M sweep; in the common case the N axis has extent 1.
    grid = (pl.cdiv(f_pad, tn), pl.cdiv(m, tm))

    in_specs = (
        [pl.BlockSpec((tm, d), lambda j, i: (i, 0)) for d in dims]     # x_k tiles
        + [pl.BlockSpec((total, tn), lambda j, i: (0, j)),             # weight slice
           pl.BlockSpec((1, tn), lambda j, i: (0, j))]                 # bias slice
    )
    out_specs = pl.BlockSpec((tm, tn), lambda j, i: (i, j))

    cost = pl.CostEstimate(
        flops=2 * m * total * f_pad,
        transcendentals=0,
        bytes_accessed=(m * total * in_itemsize
                        + total * f_pad * w_itemsize
                        + f_pad * 4
                        + m * f_pad * in_itemsize),
    )

    out2d = pl.pallas_call(
        _make_fusion_kernel(len(xs2d)),
        out_shape=jax.ShapeDtypeStruct((m, f_pad), out_dtype),
        grid_spec=pltpu.PrefetchScalarGridSpec(
            num_scalar_prefetch=0,
            grid=grid,
            in_specs=in_specs,
            out_specs=out_specs,
        ),
        compiler_params=pltpu.CompilerParams(
            dimension_semantics=("parallel", "parallel"),
            vmem_limit_bytes=vmem_limit,
        ),
        cost_estimate=cost,
    )(*xs2d, w_t, b2d)

    if f_pad != fused_dim:
        out2d = out2d[:, :fused_dim]
    return out2d.reshape(*lead_shape, fused_dim)


def init_params(key, total, fused_dim, dtype=jnp.float32):
    # Mirrors nn.Linear default init: U(-1/sqrt(total), 1/sqrt(total)).
    kw, kb = jax.random.split(key)
    bound = 1.0 / (total ** 0.5)
    weight = jax.random.uniform(kw, (fused_dim, total), dtype, -bound, bound)
    bias = jax.random.uniform(kb, (fused_dim,), dtype, -bound, bound)
    return weight, bias


if __name__ == "__main__":
    key = jax.random.PRNGKey(0)
    k_a, k_b, k_p = jax.random.split(key, 3)

    # Small shapes: batch=2, seq=8, two feature streams (24 + 40 = 64 dims),
    # fused_dim=128 (lane-dense output).
    B, S = 2, 8
    input_dims = {"vision": 24, "audio": 40}
    fused_dim = 128
    total = sum(input_dims.values())

    features = {
        "vision": jax.random.normal(k_a, (B, S, input_dims["vision"]), jnp.float32),
        "audio": jax.random.normal(k_b, (B, S, input_dims["audio"]), jnp.float32),
    }
    weight, bias = init_params(k_p, total, fused_dim)

    # Plain-JAX reference of CoreFusion semantics: concat then Linear.
    x_cat = jnp.concatenate(list(features.values()), axis=-1)
    ref = x_cat @ weight.T + bias

    # --- f32 path ---
    w_t, b2d, fd = prepare_params(weight, bias)
    out = core_fusion_forward(features, w_t, b2d, fd)
    jax.block_until_ready(out)
    assert out.shape == (B, S, fused_dim), out.shape
    assert jnp.allclose(out, ref, atol=1e-5), "f32 mismatch vs reference"

    # --- bf16-streaming path (halves HBM bytes; f32 accumulation kept) ---
    feats_bf16 = {k: v.astype(jnp.bfloat16) for k, v in features.items()}
    w_t16, b2d16, fd16 = prepare_params(weight, bias, param_dtype=jnp.bfloat16)
    out16 = core_fusion_forward(feats_bf16, w_t16, b2d16, fd16)
    jax.block_until_ready(out16)
    assert out16.shape == (B, S, fused_dim), out16.shape
    assert jnp.allclose(out16.astype(jnp.float32), ref, atol=5e-2, rtol=5e-2), \
        "bf16 mismatch vs reference"

    print("KERNEL_OK")
</pallas_src>

<mosaic_0001>
module attributes {stable_mosaic.version = 11 : i64} {
  func.func @kernel(%arg0: i32, %arg1: i32, %arg2: memref<16x24xf32, #tpu.memory_space<vmem>>, %arg3: memref<16x40xf32, #tpu.memory_space<vmem>>, %arg4: memref<64x128xf32, #tpu.memory_space<vmem>>, %arg5: memref<1x128xf32, #tpu.memory_space<vmem>>, %arg6: memref<16x128xf32, #tpu.memory_space<vmem>>) attributes {dimension_semantics = [#tpu.dimension_semantics<parallel>, #tpu.dimension_semantics<parallel>], iteration_bounds = array<i64: 1, 1>, scalar_prefetch = 0 : i64, scratch_operands = 0 : i64, tpu.core_type = #tpu.core_type<tc>, window_params = [{transform_indices = @transform_0, window_bounds = array<i64: 16, 24>}, {transform_indices = @transform_1, window_bounds = array<i64: 16, 40>}, {transform_indices = @transform_2, window_bounds = array<i64: 64, 128>}, {transform_indices = @transform_3, window_bounds = array<i64: 1, 128>}, {transform_indices = @transform_4, window_bounds = array<i64: 16, 128>}]} {
    %c0 = arith.constant 0 : index
    %c0_0 = arith.constant 0 : index
    %0 = vector.load %arg2[%c0, %c0_0] : memref<16x24xf32, #tpu.memory_space<vmem>>, vector<16x24xf32>
    %c0_1 = arith.constant 0 : index
    %c0_2 = arith.constant 0 : index
    %1 = vector.load %arg3[%c0_1, %c0_2] : memref<16x40xf32, #tpu.memory_space<vmem>>, vector<16x40xf32>
    %2 = tpu.concatenate %0, %1 in 1 : vector<16x24xf32>, vector<16x40xf32> -> vector<16x64xf32>
    %c0_3 = arith.constant 0 : index
    %c0_4 = arith.constant 0 : index
    %3 = vector.load %arg4[%c0_3, %c0_4] : memref<64x128xf32, #tpu.memory_space<vmem>>, vector<64x128xf32>
    %cst = arith.constant dense<0.000000e+00> : vector<16x128xf32>
    %4 = tpu.matmul %2, %3, %cst {dimension_numbers = #tpu.dot_dimension_numbers<[1], [0], [0], [1], [0, 0, 1, 1], [], []>} : vector<16x64xf32>, vector<64x128xf32>, vector<16x128xf32> -> vector<16x128xf32>
    %c0_5 = arith.constant 0 : index
    %c0_6 = arith.constant 0 : index
    %5 = vector.load %arg5[%c0_5, %c0_6] : memref<1x128xf32, #tpu.memory_space<vmem>>, vector<1x128xf32>
    %6 = vector.broadcast %5 : vector<1x128xf32> to vector<16x128xf32>
    %7 = arith.addf %4, %6 : vector<16x128xf32>
    %c0_7 = arith.constant 0 : index
    %c0_8 = arith.constant 0 : index
    %8 = vector.load %arg6[%c0_7, %c0_8] : memref<16x128xf32, #tpu.memory_space<vmem>>, vector<16x128xf32>
    tpu.vector_store %arg6[%c0_7, %c0_8], %7 {strides = array<i32>} : memref<16x128xf32, #tpu.memory_space<vmem>>, vector<16x128xf32>,
    return
  }
  func.func @transform_0(%arg0: i32, %arg1: i32) -> (i32, i32) {
    %c0_i32 = arith.constant 0 : i32
    %c0_i32_0 = arith.constant 0 : i32
    return %arg1, %c0_i32 : i32, i32
  }
  func.func @transform_1(%arg0: i32, %arg1: i32) -> (i32, i32) {
    %c0_i32 = arith.constant 0 : i32
    %c0_i32_0 = arith.constant 0 : i32
    return %arg1, %c0_i32 : i32, i32
  }
  func.func @transform_2(%arg0: i32, %arg1: i32) -> (i32, i32) {
    %c0_i32 = arith.constant 0 : i32
    %c0_i32_0 = arith.constant 0 : i32
    return %c0_i32, %arg0 : i32, i32
  }
  func.func @transform_3(%arg0: i32, %arg1: i32) -> (i32, i32) {
    %c0_i32 = arith.constant 0 : i32
    %c0_i32_0 = arith.constant 0 : i32
    return %c0_i32, %arg0 : i32, i32
  }
  func.func @transform_4(%arg0: i32, %arg1: i32) -> (i32, i32) {
    %c0_i32 = arith.constant 0 : i32
    return %arg1, %arg0 : i32, i32
  }
}

</mosaic_0001>

<llo_original>
// kernel: tpu_custom_call.1
$region0: #{tpu_custom_call.1}
  #allocation0 [shape = 'u32[]', space=smem, size = 0x4, offset = 0x4, fixed_abs, tag = 'smem constant byte address 0x4 - core index']
  #allocation1 [shape = 'u32[144,128]{1,0:T(1,128)}', space=vmem, size = 0x12000, scoped, tag = 'internal scratch']
  %s0 = inlined_call_operand.hbm [shape: f32[16,24], index: 0, kind: input, shape index: {}]
  %s1 = inlined_call_operand.hbm [shape: f32[16,40], index: 1, kind: input, shape index: {}]
  %s2 = inlined_call_operand.hbm [shape: f32[64,128], index: 2, kind: input, shape index: {}]
  %s3 = inlined_call_operand.vmem [shape: f32[1,128], index: 3, kind: input, shape index: {}]
  %s4 = inlined_call_operand.hbm [shape: f32[16,128], index: 4, kind: output, shape index: {}]
  %s5 = sld [smem:[#allocation0]]
  $region38: #{tpu_custom_call.1} parent=0
    _
  %s7 = ssub.s32 1, %s5
  %s8 = scalar_select 0, %s7, %s5
  $region1: #{tpu_custom_call.1} parent=0
    #allocation2 [shape = 'u8[8192]{0}', space=vmem, size = 0x2000, scoped, tag = 'input window, operand 0, single buffered']
    #allocation3 [shape = 's32[1]{0}', space=sflag, size = 0x4, scoped, tag = 'scoped memory for tpu_custom_call.1']
    #allocation4 [shape = 's32[1]{0}', space=sflag, size = 0x4, scoped, tag = 'scoped memory for tpu_custom_call.1']
    #allocation5 [shape = 'u8[8192]{0}', space=vmem, size = 0x2000, scoped, tag = 'input window, operand 1, single buffered']
    #allocation6 [shape = 's32[1]{0}', space=sflag, size = 0x4, scoped, tag = 'scoped memory for tpu_custom_call.1']
    #allocation7 [shape = 'u8[32768]{0}', space=vmem, size = 0x8000, scoped, tag = 'input window, operand 2, single buffered']
    #allocation8 [shape = 'u8[8192]{0}', space=vmem, size = 0x2000, scoped, tag = 'output window, operand 0, single buffered']
    %9 = vsyncpa [#allocation3], 0
    %10 = vsyncpa [#allocation6], 0
    %11 = vsyncpa [#allocation4], 0
    // Predicated region
    $region2: #{tpu_custom_call.1} parent=1 // pred_check
      _
    $region3: #{tpu_custom_call.1} parent=1 // pred_check_branch
      %13 = sbr.rel (0) target = $region5
    $region4: #{tpu_custom_call.1} parent=1 // pred_region
      %s15 = ssub.s32 256, 256
      %16 = vsyncadd [#allocation3], %s15
      %s17 = sshll.u32 [#allocation2], 4
      %s18 = int_to_ptr.vmem [resolvable:$true] %s17
      %23 = dma.hbm_to_vmem [thread:$0]  %s0, 256, %s18, [#allocation3], 128, 128, 8
    $region5: #{tpu_custom_call.1} parent=1 // pred_fallthru
      _
    // Predicated region
    $region6: #{tpu_custom_call.1} parent=1 // pred_check
      _
    $region7: #{tpu_custom_call.1} parent=1 // pred_check_branch
      %25 = sbr.rel (0) target = $region9
    $region8: #{tpu_custom_call.1} parent=1 // pred_region
      %s27 = ssub.s32 256, 256
      %28 = vsyncadd [#allocation6], %s27
      %s29 = sshll.u32 [#allocation5], 4
      %s30 = int_to_ptr.vmem [resolvable:$true] %s29
      %35 = dma.hbm_to_vmem [thread:$0]  %s1, 256, %s30, [#allocation6], 128, 128, 8
    $region9: #{tpu_custom_call.1} parent=1 // pred_fallthru
      _
    // Predicated region
    $region10: #{tpu_custom_call.1} parent=1 // pred_check
      _
    $region11: #{tpu_custom_call.1} parent=1 // pred_check_branch
      %37 = sbr.rel (0) target = $region13
    $region12: #{tpu_custom_call.1} parent=1 // pred_region
      %s39 = ssub.s32 1024, 1024
      %40 = vsyncadd [#allocation6], %s39
      %s41 = sshll.u32 [#allocation7], 4
      %s42 = int_to_ptr.vmem [resolvable:$true] %s41
      %47 = dma.hbm_to_vmem [thread:$0]  %s2, 1024, %s42, [#allocation6], 128, 128, 8
    $region13: #{tpu_custom_call.1} parent=1 // pred_fallthru
      _
    // Predicated region
    $region14: #{tpu_custom_call.1} parent=1 // pred_check
      _
    $region15: #{tpu_custom_call.1} parent=1 // pred_check_branch
      %49 = sbr.rel (0) target = $region17
    $region16: #{tpu_custom_call.1} parent=1 // pred_region
      _
    $region17: #{tpu_custom_call.1} parent=1 // pred_fallthru
      _
    // Predicated region
    $region18: #{tpu_custom_call.1} parent=1 // pred_check
      _
    $region19: #{tpu_custom_call.1} parent=1 // pred_check_branch
      %51 = sbr.rel (0) target = $region21
    $region20: #{tpu_custom_call.1} parent=1 // pred_region
      %52 = dma.done [#allocation3], 256
    $region21: #{tpu_custom_call.1} parent=1 // pred_fallthru
      _
    // Predicated region
    $region22: #{tpu_custom_call.1} parent=1 // pred_check
      _
    $region23: #{tpu_custom_call.1} parent=1 // pred_check_branch
      %54 = sbr.rel (0) target = $region25
    $region24: #{tpu_custom_call.1} parent=1 // pred_region
      %55 = dma.done [#allocation6], 256
    $region25: #{tpu_custom_call.1} parent=1 // pred_fallthru
      _
    // Predicated region
    $region26: #{tpu_custom_call.1} parent=1 // pred_check
      _
    $region27: #{tpu_custom_call.1} parent=1 // pred_check_branch
      %57 = sbr.rel (0) target = $region29
    $region28: #{tpu_custom_call.1} parent=1 // pred_region
      %58 = dma.done [#allocation6], 1024
    $region29: #{tpu_custom_call.1} parent=1 // pred_fallthru
      _
    %v59 = vld [vmem:[#allocation2] sm:$0xff]
    %v60 = vld [vmem:[#allocation2 + $0x8] sm:$0xff]
    %v61 = vld [vmem:[#allocation5] sm:$0xff]
    %v62 = vld [vmem:[#allocation5 + $0x8] sm:$0xff]
    %65 = vrot.lane.b32.xlu0 %v61, 24
    %v66 = vpop.permute.xlu0 %65
    %67 = vrot.lane.b32.xlu0 %v62, 24
    %v68 = vpop.permute.xlu0 %67
    %vm71 = vcmask 195584
    %v72 = vsel %vm71, %v59, %v66
    %v73 = vsel %vm71, %v60, %v68
    %v74 = vld [vmem:[#allocation7] sm:$0xff]
    %v75 = vld [vmem:[#allocation7 + $0x8] sm:$0xff]
    %v76 = vld [vmem:[#allocation7 + $0x10] sm:$0xff]
    %v77 = vld [vmem:[#allocation7 + $0x18] sm:$0xff]
    %v78 = vld [vmem:[#allocation7 + $0x20] sm:$0xff]
    %v79 = vld [vmem:[#allocation7 + $0x28] sm:$0xff]
    %v80 = vld [vmem:[#allocation7 + $0x30] sm:$0xff]
    %v81 = vld [vmem:[#allocation7 + $0x38] sm:$0xff]
    %v82 = vld [vmem:[%s3] sm:$0x1]
    %v84 = vlaneseq
    %v85 = vshrl.u32 %v84, 7
    %v86 = vsub.s32 0, %v85
    %v87 = vrot.slane %v82, %v86
    %vm89 = vcmask 523264
    %v91 = vsel %vm89, %v72, 0
    %v94 = vsel %vm89, %v73, 0
    %96 = vmatprep.subr.mxu0 0.0
    %97 = vmatpush1.msra.mxu0 %v74
    %98 = vmatprep.subr.mxu0 0.0
    %99 = vmatpush1.msra.mxu0 %v75
    %100 = vmatprep.subr.mxu0 0.0
    %101 = vmatpush1.msra.mxu0 %v76
    %102 = vmatprep.subr.mxu0 0.0
    %103 = vmatpush1.msra.mxu0 %v77
    %104 = vmatprep.subr.mxu0 0.0
    %105 = vmatpush1.msra.mxu0 %v78
    %106 = vmatprep.subr.mxu0 0.0
    %107 = vmatpush1.msra.mxu0 %v79
    %108 = vmatprep.subr.mxu0 0.0
    %109 = vmatpush1.msra.mxu0 %v80
    %110 = vmatprep.subr.mxu0 0.0
    %111 = vmatpush1.msra.mxu0 %v81
    %112 = vmatprep.subr.mxu0 0.0
    %113 = vmatpush1.msra.mxu0 0.0
    %114 = vmatprep.subr.mxu0 0.0
    %115 = vmatpush1.msra.mxu0 0.0
    %116 = vmatprep.subr.mxu0 0.0
    %117 = vmatpush1.msra.mxu0 0.0
    %118 = vmatprep.subr.mxu0 0.0
    %119 = vmatpush1.msra.mxu0 0.0
    %120 = vmatprep.subr.mxu0 0.0
    %121 = vmatpush1.msra.mxu0 0.0
    %122 = vmatprep.subr.mxu0 0.0
    %123 = vmatpush1.msra.mxu0 0.0
    %124 = vmatprep.subr.mxu0 0.0
    %125 = vmatpush1.msra.mxu0 0.0
    %126 = vmatprep.subr.mxu0 0.0
    %127 = vmatpush1.msra.mxu0 0.0
    %128 = vmatprep.subr.mxu0 0.0
    %129 = vmatpush1.msra.mxu0 0.0
    %130 = vmatprep.subr.mxu0 0.0
    %131 = vmatpush1.msra.mxu0 0.0
    %132 = vmatprep.subr.mxu0 0.0
    %133 = vmatpush1.msra.mxu0 0.0
    %134 = vmatprep.subr.mxu0 0.0
    %135 = vmatpush1.msra.mxu0 0.0
    %136 = vmatprep.subr.mxu0 0.0
    %137 = vmatpush1.msra.mxu0 0.0
    %138 = vmatprep.subr.mxu0 0.0
    %139 = vmatpush1.msra.mxu0 0.0
    %140 = vmatprep.subr.mxu0 0.0
    %141 = vmatpush1.msra.mxu0 0.0
    %142 = vmatprep.subr.mxu0 0.0
    %143 = vmatpush1.msra.mxu0 0.0
    %144 = vmatprep.subr.mxu0 0.0
    %145 = vmatpush1.msra.mxu0 0.0
    %146 = vmatprep.subr.mxu0 0.0
    %147 = vmatpush1.msra.mxu0 0.0
    %148 = vmatprep.subr.mxu0 0.0
    %149 = vmatpush1.msra.mxu0 0.0
    %150 = vmatprep.subr.mxu0 0.0
    %151 = vmatpush1.msra.mxu0 0.0
    %152 = vmatprep.subr.mxu0 0.0
    %153 = vmatpush1.msra.mxu0 0.0
    %154 = vmatprep.subr.mxu0 0.0
    %155 = vmatpush1.msra.mxu0 0.0
    %156 = vmatprep.subr.mxu0 0.0
    %157 = vmatpush1.msra.mxu0 0.0
    %158 = vmatprep.subr.mxu0 0.0
    %159 = vmatpush1.msra.mxu0 0.0
    %160 = vmatprep.mubr.f32.mxu0 0.0
    %161 = vmatmul.mubr.f32.gmra.mrb[0].mxu0 %v91
    %v162 = vpop.f32.mrb[0].mxu0
    %v163 = vadd.f32 %v87, %v162
    %v164 = vpop.f32.mrb[0].mxu0
    %165 = vmatprep.mubr.f32.mxu0 0.0
    %166 = vmatmul.mubr.f32.gmra.mrb[0].mxu0 %v94
    %v167 = vpop.f32.mrb[0].mxu0
    %v168 = vadd.f32 %v87, %v167
    %v169 = vpop.f32.mrb[0].mxu0
    %170 = vdwg.mxu0
    %171 = vst [vmem:[#allocation8] sm:$0xff] %v163
    %172 = vst [vmem:[#allocation8 + $0x8] sm:$0xff] %v168
    // Predicated region
    $region30: #{tpu_custom_call.1} parent=1 // pred_check
      _
    $region31: #{tpu_custom_call.1} parent=1 // pred_check_branch
      %174 = sbr.rel (0) target = $region33
    $region32: #{tpu_custom_call.1} parent=1 // pred_region
      %s176 = ssub.s32 256, 256
      %177 = vsyncadd [#allocation4], %s176
      %s178 = sshll.u32 [#allocation8], 4
      %s179 = int_to_ptr.vmem [resolvable:$true] %s178
      %184 = dma.vmem_to_hbm [thread:$0]  %s179, 256, %s4, [#allocation4], 128, 128, 8
    $region33: #{tpu_custom_call.1} parent=1 // pred_fallthru
      _
    // Predicated region
    $region34: #{tpu_custom_call.1} parent=1 // pred_check
      _
    $region35: #{tpu_custom_call.1} parent=1 // pred_check_branch
      %186 = sbr.rel (0) target = $region37
    $region36: #{tpu_custom_call.1} parent=1 // pred_region
      %187 = dma.done [#allocation4], 256
    $region37: #{tpu_custom_call.1} parent=1 // pred_fallthru
      _
    %188 = vsyncpa [#allocation3], 1
    %189 = vsyncpa [#allocation6], 1
    %190 = vsyncpa [#allocation4], 1

</llo_original>
